<compile_context>
chip_gen: v7x
topology: tpu7x:2x2x1
jax: 0.10.0
libtpu: 0.0.40
codegen_flags: <defaults>
</compile_context>

<pallas_src>
import jax
import jax.numpy as jnp
from jax.experimental import pallas as pl
from jax.experimental.pallas import tpu as pltpu

_LANE = 128
_SUB = 8
_SINGLE_BLOCK_BYTES = 4 << 20   # Path A threshold: 2 x 4 MiB fits v5e's 16 MiB scoped VMEM
_DMA_CHUNKS = 4                 # number of in-flight HBM->HBM DMAs on the large path


def _identity_kernel(x_ref, o_ref):
    # Whole-tile vector load + store (pure copy, matches UNet.forward).
    o_ref[...] = x_ref[...]


def _make_hbm_copy_kernel(chunks):
    """Build a kernel that issues one HBM->HBM DMA per (start, size) slab along dim 0."""
    def kernel(x_hbm, o_hbm, sem):
        copies = []
        for idx, (start, size) in enumerate(chunks):
            cp = pltpu.make_async_copy(
                x_hbm.at[pl.ds(start, size)],
                o_hbm.at[pl.ds(start, size)],
                sem.at[idx],
            )
            cp.start()
            copies.append(cp)
        for cp in copies:
            cp.wait()
    return kernel


def unet_forward(x, *, materialize=True):
    """Pallas implementation of UNet.forward (identity)."""
    if not materialize:
        # The op is a pure identity; skipping the kernel entirely is the only
        # implementation that avoids the 2x-nbytes HBM round trip.
        return x

    total = int(x.size)
    itemsize = jnp.dtype(x.dtype).itemsize
    nbytes = total * itemsize
    cost = pl.CostEstimate(flops=0, transcendentals=0, bytes_accessed=2 * nbytes)
    lane_aligned = total > 0 and total % _LANE == 0

    # ---- Path A: small input -> one full-array VMEM block copy --------------
    if nbytes <= _SINGLE_BLOCK_BYTES:
        # Present a lane-dense (N, 128) slab when possible -> unmasked vst.
        xin = x.reshape(total // _LANE, _LANE) if lane_aligned else x
        out = pl.pallas_call(
            _identity_kernel,
            out_shape=jax.ShapeDtypeStruct(xin.shape, xin.dtype),
            input_output_aliases={0: 0},
            cost_estimate=cost,
        )(xin)
        return out.reshape(x.shape)

    # ---- Path B: large input -> direct HBM->HBM DMA (no VMEM staging) -------
    if lane_aligned:
        xin = x.reshape(total // _LANE, _LANE)   # lane-dense, contiguous slabs
        n0 = xin.shape[0]
        nchunks = min(_DMA_CHUNKS, max(1, n0))
        base = pl.cdiv(n0, nchunks)
        base = max(_SUB, pl.cdiv(base, _SUB) * _SUB)  # keep slab starts 8-row aligned
    else:
        # Non-128-multiple flat size: copy the whole array in a single DMA.
        xin = x
        n0 = xin.shape[0]
        base = n0

    chunks = []
    start = 0
    while start < n0:
        size = min(base, n0 - start)
        chunks.append((start, size))
        start += size

    out = pl.pallas_call(
        _make_hbm_copy_kernel(chunks),
        out_shape=jax.ShapeDtypeStruct(xin.shape, xin.dtype),
        in_specs=[pl.BlockSpec(memory_space=pl.ANY)],
        out_specs=pl.BlockSpec(memory_space=pl.ANY),
        scratch_shapes=[pltpu.SemaphoreType.DMA((len(chunks),))],
        cost_estimate=cost,
    )(xin)
    return out.reshape(x.shape)


if __name__ == "__main__":
    key = jax.random.PRNGKey(0)
    key_small, key_big = jax.random.split(key)

    # Small NCHW input consistent with a UNet-style module: (B=2, C=4, H=16, W=16).
    x_small = jax.random.normal(key_small, (2, 4, 16, 16), dtype=jnp.float32)
    y_small = unet_forward(x_small)
    jax.block_until_ready(y_small)
    assert y_small.shape == x_small.shape and y_small.dtype == x_small.dtype
    assert jnp.array_equal(y_small, x_small), "identity forward mismatch (VMEM path)"

    # Also exercise the large-input direct HBM->HBM DMA path (8 MiB f32 slab).
    x_big = jax.random.normal(key_big, (512, 4096), dtype=jnp.float32)
    y_big = unet_forward(x_big)
    jax.block_until_ready(y_big)
    assert y_big.shape == x_big.shape and y_big.dtype == x_big.dtype
    assert jnp.array_equal(y_big, x_big), "identity forward mismatch (DMA path)"

    print("KERNEL_OK")
</pallas_src>

<mosaic_0001>
module attributes {stable_mosaic.version = 11 : i64} {
  func.func @_identity_kernel(%arg0: memref<16x128xf32, #tpu.memory_space<vmem>>, %arg1: memref<16x128xf32, #tpu.memory_space<vmem>>) attributes {dimension_semantics = [], scalar_prefetch = 0 : i64, scratch_operands = 0 : i64, tpu.core_type = #tpu.core_type<tc>} {
    %c0 = arith.constant 0 : index
    %c0_0 = arith.constant 0 : index
    %0 = vector.load %arg0[%c0, %c0_0] : memref<16x128xf32, #tpu.memory_space<vmem>>, vector<16x128xf32>
    %c0_1 = arith.constant 0 : index
    %c0_2 = arith.constant 0 : index
    %1 = vector.load %arg1[%c0_1, %c0_2] : memref<16x128xf32, #tpu.memory_space<vmem>>, vector<16x128xf32>
    tpu.vector_store %arg1[%c0_1, %c0_2], %0 {strides = array<i32>} : memref<16x128xf32, #tpu.memory_space<vmem>>, vector<16x128xf32>,
    return
  }
}

</mosaic_0001>

<llo_original>
// kernel: tpu_custom_call.1
$region0: #{tpu_custom_call.1}
  #allocation0 [shape = 'u32[]', space=smem, size = 0x4, offset = 0x4, fixed_abs, tag = 'smem constant byte address 0x4 - core index']
  #allocation1 [shape = 'u32[144,128]{1,0:T(1,128)}', space=vmem, size = 0x12000, scoped, tag = 'internal scratch']
  %s0 = inlined_call_operand.hbm [shape: f32[16,128], index: 0, kind: input, shape index: {}, may-alias: {0,1}]
  %s1 = inlined_call_operand.hbm [shape: f32[16,128], index: 1, kind: output, shape index: {}, may-alias: {0,1}]
  %s2 = sld [smem:[#allocation0]]
  $region18: #{tpu_custom_call.1} parent=0
    _
  %s4 = ssub.s32 1, %s2
  %s5 = scalar_select 0, %s4, %s2
  $region1: #{tpu_custom_call.1} parent=0
    #allocation2 [shape = 'u8[8192]{0}', space=vmem, size = 0x2000, scoped, tag = 'input window, operand 0, single buffered']
    #allocation3 [shape = 's32[1]{0}', space=sflag, size = 0x4, scoped, tag = 'scoped memory for tpu_custom_call.1']
    #allocation4 [shape = 's32[1]{0}', space=sflag, size = 0x4, scoped, tag = 'scoped memory for tpu_custom_call.1']
    #allocation5 [shape = 'u8[8192]{0}', space=vmem, size = 0x2000, scoped, tag = 'output window, operand 0, single buffered']
    %6 = vsyncpa [#allocation3], 0
    %7 = vsyncpa [#allocation4], 0
    // Predicated region
    $region2: #{tpu_custom_call.1} parent=1 // pred_check
      _
    $region3: #{tpu_custom_call.1} parent=1 // pred_check_branch
      %9 = sbr.rel (0) target = $region5
    $region4: #{tpu_custom_call.1} parent=1 // pred_region
      %s11 = ssub.s32 256, 256
      %12 = vsyncadd [#allocation3], %s11
      %s13 = sshll.u32 [#allocation2], 4
      %s14 = int_to_ptr.vmem [resolvable:$true] %s13
      %19 = dma.hbm_to_vmem [thread:$0]  %s0, 256, %s14, [#allocation3], 128, 128, 8
    $region5: #{tpu_custom_call.1} parent=1 // pred_fallthru
      _
    // Predicated region
    $region6: #{tpu_custom_call.1} parent=1 // pred_check
      _
    $region7: #{tpu_custom_call.1} parent=1 // pred_check_branch
      %21 = sbr.rel (0) target = $region9
    $region8: #{tpu_custom_call.1} parent=1 // pred_region
      %22 = dma.done [#allocation3], 256
    $region9: #{tpu_custom_call.1} parent=1 // pred_fallthru
      _
    %v23 = vld [vmem:[#allocation2] sm:$0xff]
    %v24 = vld [vmem:[#allocation2 + $0x8] sm:$0xff]
    %25 = vst [vmem:[#allocation5] sm:$0xff] %v23
    %26 = vst [vmem:[#allocation5 + $0x8] sm:$0xff] %v24
    // Predicated region
    $region10: #{tpu_custom_call.1} parent=1 // pred_check
      _
    $region11: #{tpu_custom_call.1} parent=1 // pred_check_branch
      %28 = sbr.rel (0) target = $region13
    $region12: #{tpu_custom_call.1} parent=1 // pred_region
      %s30 = ssub.s32 256, 256
      %31 = vsyncadd [#allocation4], %s30
      %s32 = sshll.u32 [#allocation5], 4
      %s33 = int_to_ptr.vmem [resolvable:$true] %s32
      %38 = dma.vmem_to_hbm [thread:$0]  %s33, 256, %s1, [#allocation4], 128, 128, 8
    $region13: #{tpu_custom_call.1} parent=1 // pred_fallthru
      _
    // Predicated region
    $region14: #{tpu_custom_call.1} parent=1 // pred_check
      _
    $region15: #{tpu_custom_call.1} parent=1 // pred_check_branch
      %40 = sbr.rel (0) target = $region17
    $region16: #{tpu_custom_call.1} parent=1 // pred_region
      %41 = dma.done [#allocation4], 256
    $region17: #{tpu_custom_call.1} parent=1 // pred_fallthru
      _
    %42 = vsyncpa [#allocation3], 1
    %43 = vsyncpa [#allocation4], 1

</llo_original>
